<compile_context>
chip_gen: v7x
topology: tpu7x:2x2x1
jax: 0.10.0
libtpu: 0.0.40
codegen_flags: <defaults>
</compile_context>

<pallas_src>
import jax
import jax.numpy as jnp
from jax.experimental import pallas as pl
from jax.experimental.pallas import tpu as pltpu


def _round_up(x: int, m: int) -> int:
    return (x + m - 1) // m * m


def _vmem_capacity_bytes() -> int:
    try:
        return int(pltpu.get_tpu_info().vmem_capacity_bytes)
    except Exception:
        return 64 * 1024 * 1024  # conservative: v7x per-TensorCore VMEM


def _simplenet_kernel(x_ref, w1_ref, b1_ref, w2_ref, b2_ref, o_ref, acc_ref):
    """Grid = (batch tiles, In reduction tiles). fc2 epilogue on the last k."""
    k = pl.program_id(1)

    @pl.when(k == 0)
    def _():
        acc_ref[...] = jnp.zeros_like(acc_ref)

    # fc1 partial product: plain (M,K)x(K,N) MXU feed (weights pre-transposed
    # once in the wrapper -> no per-step transpose), bf16 in / f32 accumulate.
    acc_ref[...] += jnp.dot(
        x_ref[...], w1_ref[...], preferred_element_type=jnp.float32
    )

    @pl.when(k == pl.num_programs(1) - 1)
    def _():
        # Bias + ReLU epilogue in f32 on the VPU.
        h = jnp.maximum(acc_ref[...] + b1_ref[...], 0.0)
        # fc2: cast activations to bf16 for the MXU, accumulate in f32.
        o = jnp.dot(h.astype(w2_ref.dtype), w2_ref[...],
                    preferred_element_type=jnp.float32)
        o_ref[...] = (o + b2_ref[...]).astype(o_ref.dtype)


def _build_call(B_pad, In_pad, H_pad, Out_pad, bt, tk, *, single_buffer_weights):
    grid = (B_pad // bt, In_pad // tk)

    # Replicated operands (constant index_map) only need a single VMEM buffer.
    wkw = {"pipeline_mode": pl.Buffered(1)} if single_buffer_weights else {}

    in_specs = [
        pl.BlockSpec((bt, tk), lambda i, k: (i, k)),                  # x tile
        pl.BlockSpec((tk, H_pad), lambda i, k: (k, 0)),               # w1 K-slab
        pl.BlockSpec((1, H_pad), lambda i, k: (0, 0), **wkw),         # b1 (resident)
        pl.BlockSpec((H_pad, Out_pad), lambda i, k: (0, 0), **wkw),   # w2 (resident)
        pl.BlockSpec((1, Out_pad), lambda i, k: (0, 0), **wkw),       # b2 (resident)
    ]
    out_specs = pl.BlockSpec((bt, Out_pad), lambda i, k: (i, 0))

    # Explicit VMEM budget: double buffers for the moving operands, single (or
    # double) for the resident weights, plus accumulator + epilogue temps.
    nw = 1 if single_buffer_weights else 2
    est = (
        2 * bt * tk * 2                 # x tiles (bf16, double-buffered)
        + 2 * tk * H_pad * 2            # w1 slabs (bf16, double-buffered)
        + nw * H_pad * Out_pad * 2      # w2 (bf16)
        + nw * (H_pad + Out_pad) * 4    # biases (f32)
        + 2 * bt * Out_pad * 4          # output tiles (f32, double-buffered)
        + bt * H_pad * 4                # f32 accumulator scratch
        + bt * (H_pad + Out_pad) * 4    # live epilogue temporaries
    )
    cap = _vmem_capacity_bytes()
    vmem_limit = min(int(cap * 0.9), max(32 * 1024 * 1024, 2 * est))

    cost = pl.CostEstimate(
        flops=2 * B_pad * (In_pad * H_pad + H_pad * Out_pad),
        transcendentals=0,
        bytes_accessed=(
            2 * (B_pad * In_pad + In_pad * H_pad + H_pad * Out_pad)   # bf16
            + 4 * (H_pad + Out_pad + B_pad * Out_pad)                 # f32
        ),
    )

    return pl.pallas_call(
        _simplenet_kernel,
        out_shape=jax.ShapeDtypeStruct((B_pad, Out_pad), jnp.float32),
        grid=grid,
        in_specs=in_specs,
        out_specs=out_specs,
        scratch_shapes=[pltpu.VMEM((bt, H_pad), jnp.float32)],
        compiler_params=pltpu.CompilerParams(
            dimension_semantics=("parallel", "arbitrary"),
            vmem_limit_bytes=vmem_limit,
        ),
        cost_estimate=cost,
    )


def simplenet_forward(x, w1, b1, w2, b2, *, batch_tile=None):
    """x: (B, In); torch-layout w1: (H, In), b1: (H,), w2: (Out, H), b2: (Out,)."""
    B, In = x.shape
    H = w1.shape[0]
    Out = w2.shape[0]

    cap = _vmem_capacity_bytes()
    if batch_tile is None:
        # Larger tiles on 128 MiB parts (v5e/v6e); smaller on v7x's 64 MiB/TC.
        batch_tile = 512 if cap >= 96 * 1024 * 1024 else 256

    # Lane-dense padding: contraction / output dims to multiples of 128.
    In_pad = _round_up(In, 128)
    H_pad = _round_up(H, 128)
    Out_pad = _round_up(Out, 128)

    # Reduction (In) tile: largest of {512, 256, 128} that divides In_pad.
    tk = next(t for t in (512, 256, 128) if In_pad % t == 0)

    # Batch tile: multiple of 8 sublanes, clamped to the (padded) batch.
    bt = _round_up(min(batch_tile, _round_up(B, 8)), 8)
    B_pad = _round_up(B, bt)

    # One-time wrapper prep (amortized over all grid steps / calls): transpose
    # weights to plain (K, N), cast MXU operands to bf16, zero-pad lane-dense.
    x_p = jnp.pad(x.astype(jnp.bfloat16), ((0, B_pad - B), (0, In_pad - In)))
    w1t = jnp.pad(w1.T.astype(jnp.bfloat16), ((0, In_pad - In), (0, H_pad - H)))
    w2t = jnp.pad(w2.T.astype(jnp.bfloat16), ((0, H_pad - H), (0, Out_pad - Out)))
    b1_r = jnp.pad(b1.astype(jnp.float32), (0, H_pad - H)).reshape(1, H_pad)
    b2_r = jnp.pad(b2.astype(jnp.float32), (0, Out_pad - Out)).reshape(1, Out_pad)

    args = (x_p, w1t, b1_r, w2t, b2_r)
    try:
        out = _build_call(B_pad, In_pad, H_pad, Out_pad, bt, tk,
                          single_buffer_weights=True)(*args)
    except Exception:
        # Fallback if this JAX build rejects pl.Buffered(1) on replicated specs.
        out = _build_call(B_pad, In_pad, H_pad, Out_pad, bt, tk,
                          single_buffer_weights=False)(*args)

    # TODO(synk): for very large H/Out a further grid axis over H (fc2
    # reduction) / Out would shrink per-step weight residency even more.
    return out[:B, :Out]


def _reference_f32(x, w1, b1, w2, b2):
    h = jnp.maximum(x @ w1.T + b1, 0.0)
    return h @ w2.T + b2


def _reference_bf16(x, w1, b1, w2, b2):
    xb, w1b, w2b = (a.astype(jnp.bfloat16) for a in (x, w1, w2))
    h = jnp.maximum(
        jnp.dot(xb, w1b.T, preferred_element_type=jnp.float32) + b1, 0.0)
    return jnp.dot(h.astype(jnp.bfloat16), w2b.T,
                   preferred_element_type=jnp.float32) + b2


if __name__ == "__main__":
    key = jax.random.PRNGKey(0)
    batch, input_size, hidden_size, output_size = 8, 32, 64, 2

    kx, kw1, kb1, kw2, kb2 = jax.random.split(key, 5)
    x = jax.random.normal(kx, (batch, input_size), dtype=jnp.float32)

    # Deterministic parameter init (uniform, torch-style Linear init scale).
    bound1 = 1.0 / (input_size ** 0.5)
    bound2 = 1.0 / (hidden_size ** 0.5)
    w1 = jax.random.uniform(kw1, (hidden_size, input_size), jnp.float32, -bound1, bound1)
    b1 = jax.random.uniform(kb1, (hidden_size,), jnp.float32, -bound1, bound1)
    w2 = jax.random.uniform(kw2, (output_size, hidden_size), jnp.float32, -bound2, bound2)
    b2 = jax.random.uniform(kb2, (output_size,), jnp.float32, -bound2, bound2)

    out = simplenet_forward(x, w1, b1, w2, b2)
    out = jax.block_until_ready(out)
    assert out.shape == (batch, output_size)

    # Exact-path check (same bf16 matmul inputs, f32 accumulation/epilogue).
    ref_bf16 = _reference_bf16(x, w1, b1, w2, b2)
    assert jnp.allclose(out, ref_bf16, atol=1e-3, rtol=1e-3), "mismatch vs bf16 reference"

    # Fidelity check against the full-f32 torch semantics.
    ref_f32 = _reference_f32(x, w1, b1, w2, b2)
    assert jnp.allclose(out, ref_f32, atol=2e-2, rtol=2e-2), "mismatch vs f32 reference"

    print("KERNEL_OK")
</pallas_src>

<mosaic_0001>
module attributes {stable_mosaic.version = 11 : i64} {
  func.func @_simplenet_kernel(%arg0: i32, %arg1: i32, %arg2: memref<8x128xbf16, #tpu.memory_space<vmem>>, %arg3: memref<128x128xbf16, #tpu.memory_space<vmem>>, %arg4: memref<1x128xf32, #tpu.memory_space<vmem>>, %arg5: memref<128x128xbf16, #tpu.memory_space<vmem>>, %arg6: memref<1x128xf32, #tpu.memory_space<vmem>>, %arg7: memref<8x128xf32, #tpu.memory_space<vmem>>, %arg8: memref<8x128xf32, #tpu.memory_space<vmem>>) attributes {dimension_semantics = [#tpu.dimension_semantics<parallel>, #tpu.dimension_semantics<arbitrary>], iteration_bounds = array<i64: 1, 1>, scalar_prefetch = 0 : i64, scratch_operands = 1 : i64, tpu.core_type = #tpu.core_type<tc>, window_params = [{transform_indices = @transform_0, window_bounds = array<i64: 8, 128>}, {transform_indices = @transform_1, window_bounds = array<i64: 128, 128>}, {pipeline_mode = #tpu.pipeline_mode<synchronous>, transform_indices = @transform_2, window_bounds = array<i64: 1, 128>}, {pipeline_mode = #tpu.pipeline_mode<synchronous>, transform_indices = @transform_3, window_bounds = array<i64: 128, 128>}, {pipeline_mode = #tpu.pipeline_mode<synchronous>, transform_indices = @transform_4, window_bounds = array<i64: 1, 128>}, {transform_indices = @transform_5, window_bounds = array<i64: 8, 128>}]} {
    %c0_i32 = arith.constant 0 : i32
    %0 = arith.cmpi eq, %arg1, %c0_i32 : i32
    %1 = arith.extui %0 : i1 to i32
    %c0_i32_0 = arith.constant 0 : i32
    %2 = arith.cmpi ne, %1, %c0_i32_0 : i32
    scf.if %2 {
      %cst_10 = arith.constant 0.000000e+00 : f32
      %12 = vector.broadcast %cst_10 : f32 to vector<8x128xf32>
      %c0_11 = arith.constant 0 : index
      %c0_12 = arith.constant 0 : index
      %13 = vector.load %arg8[%c0_11, %c0_12] : memref<8x128xf32, #tpu.memory_space<vmem>>, vector<8x128xf32>
      tpu.vector_store %arg8[%c0_11, %c0_12], %12 {strides = array<i32>} : memref<8x128xf32, #tpu.memory_space<vmem>>, vector<8x128xf32>,
    } else {
    }
    %c0 = arith.constant 0 : index
    %c0_1 = arith.constant 0 : index
    %3 = vector.load %arg8[%c0, %c0_1] : memref<8x128xf32, #tpu.memory_space<vmem>>, vector<8x128xf32>
    %c0_2 = arith.constant 0 : index
    %c0_3 = arith.constant 0 : index
    %4 = vector.load %arg2[%c0_2, %c0_3] : memref<8x128xbf16, #tpu.memory_space<vmem>>, vector<8x128xbf16>
    %c0_4 = arith.constant 0 : index
    %c0_5 = arith.constant 0 : index
    %5 = vector.load %arg3[%c0_4, %c0_5] : memref<128x128xbf16, #tpu.memory_space<vmem>>, vector<128x128xbf16>
    %cst = arith.constant dense<0.000000e+00> : vector<8x128xf32>
    %6 = tpu.matmul %4, %5, %cst {dimension_numbers = #tpu.dot_dimension_numbers<[1], [0], [0], [1], [0, 0, 1, 1], [], []>} : vector<8x128xbf16>, vector<128x128xbf16>, vector<8x128xf32> -> vector<8x128xf32>
    %7 = arith.addf %3, %6 : vector<8x128xf32>
    %c0_6 = arith.constant 0 : index
    %c0_7 = arith.constant 0 : index
    %8 = vector.load %arg8[%c0_6, %c0_7] : memref<8x128xf32, #tpu.memory_space<vmem>>, vector<8x128xf32>
    tpu.vector_store %arg8[%c0_6, %c0_7], %7 {strides = array<i32>} : memref<8x128xf32, #tpu.memory_space<vmem>>, vector<8x128xf32>,
    %c0_i32_8 = arith.constant 0 : i32
    %9 = arith.cmpi eq, %arg1, %c0_i32_8 : i32
    %10 = arith.extui %9 : i1 to i32
    %c0_i32_9 = arith.constant 0 : i32
    %11 = arith.cmpi ne, %10, %c0_i32_9 : i32
    scf.if %11 {
      %c0_10 = arith.constant 0 : index
      %c0_11 = arith.constant 0 : index
      %12 = vector.load %arg8[%c0_10, %c0_11] : memref<8x128xf32, #tpu.memory_space<vmem>>, vector<8x128xf32>
      %c0_12 = arith.constant 0 : index
      %c0_13 = arith.constant 0 : index
      %13 = vector.load %arg4[%c0_12, %c0_13] : memref<1x128xf32, #tpu.memory_space<vmem>>, vector<1x128xf32>
      %14 = vector.broadcast %13 : vector<1x128xf32> to vector<8x128xf32>
      %15 = arith.addf %12, %14 : vector<8x128xf32>
      %cst_14 = arith.constant 0.000000e+00 : f32
      %16 = vector.broadcast %cst_14 : f32 to vector<8x128xf32>
      %17 = arith.maximumf %15, %16 : vector<8x128xf32>
      %18 = arith.truncf %17 : vector<8x128xf32> to vector<8x128xbf16>
      %c0_15 = arith.constant 0 : index
      %c0_16 = arith.constant 0 : index
      %19 = vector.load %arg5[%c0_15, %c0_16] : memref<128x128xbf16, #tpu.memory_space<vmem>>, vector<128x128xbf16>
      %cst_17 = arith.constant dense<0.000000e+00> : vector<8x128xf32>
      %20 = tpu.matmul %18, %19, %cst_17 {dimension_numbers = #tpu.dot_dimension_numbers<[1], [0], [0], [1], [0, 0, 1, 1], [], []>} : vector<8x128xbf16>, vector<128x128xbf16>, vector<8x128xf32> -> vector<8x128xf32>
      %c0_18 = arith.constant 0 : index
      %c0_19 = arith.constant 0 : index
      %21 = vector.load %arg6[%c0_18, %c0_19] : memref<1x128xf32, #tpu.memory_space<vmem>>, vector<1x128xf32>
      %22 = vector.broadcast %21 : vector<1x128xf32> to vector<8x128xf32>
      %23 = arith.addf %20, %22 : vector<8x128xf32>
      %c0_20 = arith.constant 0 : index
      %c0_21 = arith.constant 0 : index
      %24 = vector.load %arg7[%c0_20, %c0_21] : memref<8x128xf32, #tpu.memory_space<vmem>>, vector<8x128xf32>
      tpu.vector_store %arg7[%c0_20, %c0_21], %23 {strides = array<i32>} : memref<8x128xf32, #tpu.memory_space<vmem>>, vector<8x128xf32>,
    } else {
    }
    return
  }
  func.func @transform_0(%arg0: i32, %arg1: i32) -> (i32, i32) {
    %c0_i32 = arith.constant 0 : i32
    return %arg0, %arg1 : i32, i32
  }
  func.func @transform_1(%arg0: i32, %arg1: i32) -> (i32, i32) {
    %c0_i32 = arith.constant 0 : i32
    %c0_i32_0 = arith.constant 0 : i32
    return %arg1, %c0_i32 : i32, i32
  }
  func.func @transform_2(%arg0: i32, %arg1: i32) -> (i32, i32) {
    %c0_i32 = arith.constant 0 : i32
    %c0_i32_0 = arith.constant 0 : i32
    %c0_i32_1 = arith.constant 0 : i32
    return %c0_i32, %c0_i32_0 : i32, i32
  }
  func.func @transform_3(%arg0: i32, %arg1: i32) -> (i32, i32) {
    %c0_i32 = arith.constant 0 : i32
    %c0_i32_0 = arith.constant 0 : i32
    %c0_i32_1 = arith.constant 0 : i32
    return %c0_i32, %c0_i32_0 : i32, i32
  }
  func.func @transform_4(%arg0: i32, %arg1: i32) -> (i32, i32) {
    %c0_i32 = arith.constant 0 : i32
    %c0_i32_0 = arith.constant 0 : i32
    %c0_i32_1 = arith.constant 0 : i32
    return %c0_i32, %c0_i32_0 : i32, i32
  }
  func.func @transform_5(%arg0: i32, %arg1: i32) -> (i32, i32) {
    %c0_i32 = arith.constant 0 : i32
    %c0_i32_0 = arith.constant 0 : i32
    return %arg0, %c0_i32 : i32, i32
  }
}

module attributes {stable_mosaic.version = 11 : i64} {
  func.func @_simplenet_kernel(%arg0: i32, %arg1: i32, %arg2: memref<8x128xbf16, #tpu.memory_space<vmem>>, %arg3: memref<128x128xbf16, #tpu.memory_space<vmem>>, %arg4: memref<1x128xf32, #tpu.memory_space<vmem>>, %arg5: memref<128x128xbf16, #tpu.memory_space<vmem>>, %arg6: memref<1x128xf32, #tpu.memory_space<vmem>>, %arg7: memref<8x128xf32, #tpu.memory_space<vmem>>, %arg8: memref<8x128xf32, #tpu.memory_space<vmem>>) attributes {dimension_semantics = [#tpu.dimension_semantics<parallel>, #tpu.dimension_semantics<arbitrary>], iteration_bounds = array<i64: 1, 1>, scalar_prefetch = 0 : i64, scratch_operands = 1 : i64, tpu.core_type = #tpu.core_type<tc>, window_params = [{transform_indices = @transform_0, window_bounds = array<i64: 8, 128>}, {transform_indices = @transform_1, window_bounds = array<i64: 128, 128>}, {pipeline_mode = #tpu.pipeline_mode<synchronous>, transform_indices = @transform_2, window_bounds = array<i64: 1, 128>}, {pipeline_mode = #tpu.pipeline_mode<synchronous>, transform_indices = @transform_3, window_bounds = array<i64: 128, 128>}, {pipeline_mode = #tpu.pipeline_mode<synchronous>, transform_indices = @transform_4, window_bounds = array<i64: 1, 128>}, {transform_indices = @transform_5, window_bounds = array<i64: 8, 128>}]} {
    %c0_i32 = arith.constant 0 : i32
    %0 = arith.cmpi eq, %arg1, %c0_i32 : i32
    %1 = arith.extui %0 : i1 to i32
    %c0_i32_0 = arith.constant 0 : i32
    %2 = arith.cmpi ne, %1, %c0_i32_0 : i32
    scf.if %2 {
      %cst_10 = arith.constant 0.000000e+00 : f32
      %12 = vector.broadcast %cst_10 : f32 to vector<8x128xf32>
      %c0_11 = arith.constant 0 : index
      %c0_12 = arith.constant 0 : index
      %13 = vector.load %arg8[%c0_11, %c0_12] : memref<8x128xf32, #tpu.memory_space<vmem>>, vector<8x128xf32>
      tpu.vector_store %arg8[%c0_11, %c0_12], %12 {strides = array<i32>} : memref<8x128xf32, #tpu.memory_space<vmem>>, vector<8x128xf32>,
    } else {
    }
    %c0 = arith.constant 0 : index
    %c0_1 = arith.constant 0 : index
    %3 = vector.load %arg8[%c0, %c0_1] : memref<8x128xf32, #tpu.memory_space<vmem>>, vector<8x128xf32>
    %c0_2 = arith.constant 0 : index
    %c0_3 = arith.constant 0 : index
    %4 = vector.load %arg2[%c0_2, %c0_3] : memref<8x128xbf16, #tpu.memory_space<vmem>>, vector<8x128xbf16>
    %c0_4 = arith.constant 0 : index
    %c0_5 = arith.constant 0 : index
    %5 = vector.load %arg3[%c0_4, %c0_5] : memref<128x128xbf16, #tpu.memory_space<vmem>>, vector<128x128xbf16>
    %cst = arith.constant dense<0.000000e+00> : vector<8x128xf32>
    %6 = tpu.matmul %4, %5, %cst {dimension_numbers = #tpu.dot_dimension_numbers<[1], [0], [0], [1], [0, 0, 1, 1], [], []>} : vector<8x128xbf16>, vector<128x128xbf16>, vector<8x128xf32> -> vector<8x128xf32>
    %7 = arith.addf %3, %6 : vector<8x128xf32>
    %c0_6 = arith.constant 0 : index
    %c0_7 = arith.constant 0 : index
    %8 = vector.load %arg8[%c0_6, %c0_7] : memref<8x128xf32, #tpu.memory_space<vmem>>, vector<8x128xf32>
    tpu.vector_store %arg8[%c0_6, %c0_7], %7 {strides = array<i32>} : memref<8x128xf32, #tpu.memory_space<vmem>>, vector<8x128xf32>,
    %c0_i32_8 = arith.constant 0 : i32
    %9 = arith.cmpi eq, %arg1, %c0_i32_8 : i32
    %10 = arith.extui %9 : i1 to i32
    %c0_i32_9 = arith.constant 0 : i32
    %11 = arith.cmpi ne, %10, %c0_i32_9 : i32
    scf.if %11 {
      %c0_10 = arith.constant 0 : index
      %c0_11 = arith.constant 0 : index
      %12 = vector.load %arg8[%c0_10, %c0_11] : memref<8x128xf32, #tpu.memory_space<vmem>>, vector<8x128xf32>
      %c0_12 = arith.constant 0 : index
      %c0_13 = arith.constant 0 : index
      %13 = vector.load %arg4[%c0_12, %c0_13] : memref<1x128xf32, #tpu.memory_space<vmem>>, vector<1x128xf32>
      %14 = vector.broadcast %13 : vector<1x128xf32> to vector<8x128xf32>
      %15 = arith.addf %12, %14 : vector<8x128xf32>
      %cst_14 = arith.constant 0.000000e+00 : f32
      %16 = vector.broadcast %cst_14 : f32 to vector<8x128xf32>
      %17 = arith.maximumf %15, %16 : vector<8x128xf32>
      %18 = arith.truncf %17 : vector<8x128xf32> to vector<8x128xbf16>
      %c0_15 = arith.constant 0 : index
      %c0_16 = arith.constant 0 : index
      %19 = vector.load %arg5[%c0_15, %c0_16] : memref<128x128xbf16, #tpu.memory_space<vmem>>, vector<128x128xbf16>
      %cst_17 = arith.constant dense<0.000000e+00> : vector<8x128xf32>
      %20 = tpu.matmul %18, %19, %cst_17 {dimension_numbers = #tpu.dot_dimension_numbers<[1], [0], [0], [1], [0, 0, 1, 1], [], []>} : vector<8x128xbf16>, vector<128x128xbf16>, vector<8x128xf32> -> vector<8x128xf32>
      %c0_18 = arith.constant 0 : index
      %c0_19 = arith.constant 0 : index
      %21 = vector.load %arg6[%c0_18, %c0_19] : memref<1x128xf32, #tpu.memory_space<vmem>>, vector<1x128xf32>
      %22 = vector.broadcast %21 : vector<1x128xf32> to vector<8x128xf32>
      %23 = arith.addf %20, %22 : vector<8x128xf32>
      %c0_20 = arith.constant 0 : index
      %c0_21 = arith.constant 0 : index
      %24 = vector.load %arg7[%c0_20, %c0_21] : memref<8x128xf32, #tpu.memory_space<vmem>>, vector<8x128xf32>
      tpu.vector_store %arg7[%c0_20, %c0_21], %23 {strides = array<i32>} : memref<8x128xf32, #tpu.memory_space<vmem>>, vector<8x128xf32>,
    } else {
    }
    return
  }
  func.func @transform_0(%arg0: i32, %arg1: i32) -> (i32, i32) {
    %c0_i32 = arith.constant 0 : i32
    return %arg0, %arg1 : i32, i32
  }
  func.func @transform_1(%arg0: i32, %arg1: i32) -> (i32, i32) {
    %c0_i32 = arith.constant 0 : i32
    %c0_i32_0 = arith.constant 0 : i32
    return %arg1, %c0_i32 : i32, i32
  }
  func.func @transform_2(%arg0: i32, %arg1: i32) -> (i32, i32) {
    %c0_i32 = arith.constant 0 : i32
    %c0_i32_0 = arith.constant 0 : i32
    %c0_i32_1 = arith.constant 0 : i32
    return %c0_i32, %c0_i32_0 : i32, i32
  }
  func.func @transform_3(%arg0: i32, %arg1: i32) -> (i32, i32) {
    %c0_i32 = arith.constant 0 : i32
    %c0_i32_0 = arith.constant 0 : i32
    %c0_i32_1 = arith.constant 0 : i32
    return %c0_i32, %c0_i32_0 : i32, i32
  }
  func.func @transform_4(%arg0: i32, %arg1: i32) -> (i32, i32) {
    %c0_i32 = arith.constant 0 : i32
    %c0_i32_0 = arith.constant 0 : i32
    %c0_i32_1 = arith.constant 0 : i32
    return %c0_i32, %c0_i32_0 : i32, i32
  }
  func.func @transform_5(%arg0: i32, %arg1: i32) -> (i32, i32) {
    %c0_i32 = arith.constant 0 : i32
    %c0_i32_0 = arith.constant 0 : i32
    return %arg0, %c0_i32 : i32, i32
  }
}

</mosaic_0001>

<llo_original>
// kernel: tpu_custom_call.1
$region0: #{tpu_custom_call.1}
  #allocation0 [shape = 'u32[]', space=smem, size = 0x4, offset = 0x4, fixed_abs, tag = 'smem constant byte address 0x4 - core index']
  #allocation1 [shape = 'u32[144,128]{1,0:T(1,128)}', space=vmem, size = 0x12000, scoped, tag = 'internal scratch']
  #allocation2 [shape = 'f32[8,128]{1,0:T(8,128)}', space=vmem, size = 0x1000, scoped, tag = 'scratch operand']
  %s0 = inlined_call_operand.hbm [shape: bf16[8,128], index: 0, kind: input, shape index: {}]
  %s1 = inlined_call_operand.hbm [shape: bf16[128,128], index: 1, kind: input, shape index: {}]
  %s2 = inlined_call_operand.vmem [shape: f32[1,128], index: 2, kind: input, shape index: {}]
  %s3 = inlined_call_operand.hbm [shape: bf16[128,128], index: 3, kind: input, shape index: {}]
  %s4 = inlined_call_operand.vmem [shape: f32[1,128], index: 4, kind: input, shape index: {}]
  %s5 = inlined_call_operand.hbm [shape: f32[8,128], index: 5, kind: output, shape index: {}]
  %s6 = sld [smem:[#allocation0]]
  $region50: #{tpu_custom_call.1} parent=0
    _
  %s8 = ssub.s32 1, %s6
  %s9 = scalar_select 0, %s8, %s6
  $region1: #{tpu_custom_call.1} parent=0
    #allocation3 [shape = 'u8[2048]{0}', space=vmem, size = 0x800, scoped, tag = 'input window, operand 0, single buffered']
    #allocation4 [shape = 's32[1]{0}', space=sflag, size = 0x4, scoped, tag = 'scoped memory for tpu_custom_call.1']
    #allocation5 [shape = 's32[1]{0}', space=sflag, size = 0x4, scoped, tag = 'scoped memory for tpu_custom_call.1']
    #allocation6 [shape = 'u8[32768]{0}', space=vmem, size = 0x8000, scoped, tag = 'input window, operand 1, single buffered']
    #allocation7 [shape = 's32[1]{0}', space=sflag, size = 0x4, scoped, tag = 'scoped memory for tpu_custom_call.1']
    #allocation8 [shape = 'u8[32768]{0}', space=vmem, size = 0x8000, scoped, tag = 'input window, operand 3, single buffered']
    #allocation9 [shape = 'u8[4096]{0}', space=vmem, size = 0x1000, scoped, tag = 'output window, operand 0, single buffered']
    %10 = vsyncpa [#allocation4], 0
    %11 = vsyncpa [#allocation7], 0
    %12 = vsyncpa [#allocation5], 0
    // Predicated region
    $region2: #{tpu_custom_call.1} parent=1 // pred_check
      _
    $region3: #{tpu_custom_call.1} parent=1 // pred_check_branch
      %14 = sbr.rel (0) target = $region5
    $region4: #{tpu_custom_call.1} parent=1 // pred_region
      %s16 = ssub.s32 64, 64
      %17 = vsyncadd [#allocation4], %s16
      %s19 = sshll.u32 [#allocation3], 4
      %s20 = int_to_ptr.vmem [resolvable:$true] %s19
      %22 = dma.hbm_to_vmem [thread:$0]  %s0, 64, %s20, [#allocation4]
    $region5: #{tpu_custom_call.1} parent=1 // pred_fallthru
      _
    // Predicated region
    $region6: #{tpu_custom_call.1} parent=1 // pred_check
      _
    $region7: #{tpu_custom_call.1} parent=1 // pred_check_branch
      %24 = sbr.rel (0) target = $region9
    $region8: #{tpu_custom_call.1} parent=1 // pred_region
      %s26 = ssub.s32 1024, 1024
      %27 = vsyncadd [#allocation7], %s26
      %s28 = sshll.u32 [#allocation6], 4
      %s29 = int_to_ptr.vmem [resolvable:$true] %s28
      %34 = dma.hbm_to_vmem [thread:$0]  %s1, 1024, %s29, [#allocation7], 64, 64, 4
    $region9: #{tpu_custom_call.1} parent=1 // pred_fallthru
      _
    // Predicated region
    $region10: #{tpu_custom_call.1} parent=1 // pred_check
      _
    $region11: #{tpu_custom_call.1} parent=1 // pred_check_branch
      %36 = sbr.rel (0) target = $region13
    $region12: #{tpu_custom_call.1} parent=1 // pred_region
      _
    $region13: #{tpu_custom_call.1} parent=1 // pred_fallthru
      _
    // Predicated region
    $region14: #{tpu_custom_call.1} parent=1 // pred_check
      _
    $region15: #{tpu_custom_call.1} parent=1 // pred_check_branch
      %38 = sbr.rel (0) target = $region17
    $region16: #{tpu_custom_call.1} parent=1 // pred_region
      %s40 = ssub.s32 1024, 1024
      %41 = vsyncadd [#allocation7], %s40
      %s42 = sshll.u32 [#allocation8], 4
      %s43 = int_to_ptr.vmem [resolvable:$true] %s42
      %48 = dma.hbm_to_vmem [thread:$0]  %s3, 1024, %s43, [#allocation7], 64, 64, 4
    $region17: #{tpu_custom_call.1} parent=1 // pred_fallthru
      _
    // Predicated region
    $region18: #{tpu_custom_call.1} parent=1 // pred_check
      _
    $region19: #{tpu_custom_call.1} parent=1 // pred_check_branch
      %50 = sbr.rel (0) target = $region21
    $region20: #{tpu_custom_call.1} parent=1 // pred_region
      _
    $region21: #{tpu_custom_call.1} parent=1 // pred_fallthru
      _
    // Predicated region
    $region22: #{tpu_custom_call.1} parent=1 // pred_check
      _
    $region23: #{tpu_custom_call.1} parent=1 // pred_check_branch
      %52 = sbr.rel (0) target = $region25
    $region24: #{tpu_custom_call.1} parent=1 // pred_region
      %53 = dma.done [#allocation4], 64
    $region25: #{tpu_custom_call.1} parent=1 // pred_fallthru
      _
    // Predicated region
    $region26: #{tpu_custom_call.1} parent=1 // pred_check
      _
    $region27: #{tpu_custom_call.1} parent=1 // pred_check_branch
      %55 = sbr.rel (0) target = $region29
    $region28: #{tpu_custom_call.1} parent=1 // pred_region
      %56 = dma.done [#allocation7], 1024
    $region29: #{tpu_custom_call.1} parent=1 // pred_fallthru
      _
    // Predicated region
    $region30: #{tpu_custom_call.1} parent=1 // pred_check
      _
    $region31: #{tpu_custom_call.1} parent=1 // pred_check_branch
      %58 = sbr.rel (0) target = $region33
    $region32: #{tpu_custom_call.1} parent=1 // pred_region
      %59 = dma.done [#allocation7], 1024
    $region33: #{tpu_custom_call.1} parent=1 // pred_fallthru
      _
    %p61 = scmp.eq.s32.totalorder 0, 0
    // Predicated region
    $region34: #{tpu_custom_call.1} parent=1 // pred_check
      %p62 = pneg %p61
    $region35: #{tpu_custom_call.1} parent=1 // pred_check_branch
      %64 = sbr.rel (%p62) target = $region37
    $region36: #{tpu_custom_call.1} parent=1 // pred_region
      %65 = vst [vmem:[#allocation2] sm:$0xff] 0.0
    $region37: #{tpu_custom_call.1} parent=1 // pred_fallthru
      _
    %v66 = vld [vmem:[#allocation2] sm:$0xff]
    %v67 = vld [vmem:[#allocation3] sm:$0xf]
    %v68 = vld [vmem:[#allocation6] sm:$0xf]
    %v69 = vld [vmem:[#allocation6 + $0x4] sm:$0xf]
    %v70 = vld [vmem:[#allocation6 + $0x8] sm:$0xf]
    %v71 = vld [vmem:[#allocation6 + $0xc] sm:$0xf]
    %v72 = vld [vmem:[#allocation6 + $0x10] sm:$0xf]
    %v73 = vld [vmem:[#allocation6 + $0x14] sm:$0xf]
    %v74 = vld [vmem:[#allocation6 + $0x18] sm:$0xf]
    %v75 = vld [vmem:[#allocation6 + $0x1c] sm:$0xf]
    %v76 = vld [vmem:[#allocation6 + $0x20] sm:$0xf]
    %v77 = vld [vmem:[#allocation6 + $0x24] sm:$0xf]
    %v78 = vld [vmem:[#allocation6 + $0x28] sm:$0xf]
    %v79 = vld [vmem:[#allocation6 + $0x2c] sm:$0xf]
    %v80 = vld [vmem:[#allocation6 + $0x30] sm:$0xf]
    %v81 = vld [vmem:[#allocation6 + $0x34] sm:$0xf]
    %v82 = vld [vmem:[#allocation6 + $0x38] sm:$0xf]
    %v83 = vld [vmem:[#allocation6 + $0x3c] sm:$0xf]
    %v100 = vunpack.c.l.b16 %v68
    %v101 = vunpack.c.l.b16 %v69
    %v102 = vunpack.c.l.b16 %v70
    %v103 = vunpack.c.l.b16 %v71
    %v104 = vunpack.c.l.b16 %v72
    %v105 = vunpack.c.l.b16 %v73
    %v106 = vunpack.c.l.b16 %v74
    %v107 = vunpack.c.l.b16 %v75
    %v108 = vunpack.c.l.b16 %v76
    %v109 = vunpack.c.l.b16 %v77
    %v110 = vunpack.c.l.b16 %v78
    %v111 = vunpack.c.l.b16 %v79
    %v112 = vunpack.c.l.b16 %v80
    %v113 = vunpack.c.l.b16 %v81
    %v114 = vunpack.c.l.b16 %v82
    %v115 = vunpack.c.l.b16 %v83
    %v116 = vpack.c.b16 %v101, %v100
    %v117 = vpack.c.b16 %v103, %v102
    %v118 = vpack.c.b16 %v105, %v104
    %v119 = vpack.c.b16 %v107, %v106
    %v120 = vpack.c.b16 %v109, %v108
    %v121 = vpack.c.b16 %v111, %v110
    %v122 = vpack.c.b16 %v113, %v112
    %v123 = vpack.c.b16 %v115, %v114
    %132 = vmatprep.subr.bf16.mxu0 0
    %133 = vmatpush1.bf16.msra.mxu0 %v116
    %134 = vmatprep.subr.bf16.mxu0 0
    %135 = vmatpush1.bf16.msra.mxu0 %v117
    %136 = vmatprep.subr.bf16.mxu0 0
    %137 = vmatpush1.bf16.msra.mxu0 %v118
    %138 = vmatprep.subr.bf16.mxu0 0
    %139 = vmatpush1.bf16.msra.mxu0 %v119
    %140 = vmatprep.subr.bf16.mxu0 0
    %141 = vmatpush1.bf16.msra.mxu0 %v120
    %142 = vmatprep.subr.bf16.mxu0 0
    %143 = vmatpush1.bf16.msra.mxu0 %v121
    %144 = vmatprep.subr.bf16.mxu0 0
    %145 = vmatpush1.bf16.msra.mxu0 %v122
    %146 = vmatprep.subr.bf16.mxu0 0
    %147 = vmatpush1.bf16.msra.mxu0 %v123
    %148 = vmatprep.subr.bf16.mxu0 0
    %149 = vmatpush1.bf16.msra.mxu0 0
    %150 = vmatprep.subr.bf16.mxu0 0
    %151 = vmatpush1.bf16.msra.mxu0 0
    %152 = vmatprep.subr.bf16.mxu0 0
    %153 = vmatpush1.bf16.msra.mxu0 0
    %154 = vmatprep.subr.bf16.mxu0 0
    %155 = vmatpush1.bf16.msra.mxu0 0
    %156 = vmatprep.subr.bf16.mxu0 0
    %157 = vmatpush1.bf16.msra.mxu0 0
    %158 = vmatprep.subr.bf16.mxu0 0
    %159 = vmatpush1.bf16.msra.mxu0 0
    %160 = vmatprep.subr.bf16.mxu0 0
    %161 = vmatpush1.bf16.msra.mxu0 0
    %162 = vmatprep.subr.bf16.mxu0 0
    %163 = vmatpush1.bf16.msra.mxu0 0
    %164 = vmatprep.mubr.bf16.mxu0 0
    %165 = vmatmul.mubr.bf16.gmra.mrb[0].mxu0 %v67
    %v166 = vpop.f32.mrb[0].mxu0
    %v167 = vadd.f32 0.0, %v166
    %v168 = vpop.f32.mrb[0].mxu0
    %v169 = vpop.f32.mrb[0].mxu0
    %v170 = vpop.f32.mrb[0].mxu0
    %171 = vdwg.mxu0
    %v172 = vadd.f32 %v66, %v167
    %173 = vst [vmem:[#allocation2] sm:$0xff] %v172
    // Predicated region
    $region38: #{tpu_custom_call.1} parent=1 // pred_check
      %p174 = pneg %p61
    $region39: #{tpu_custom_call.1} parent=1 // pred_check_branch
      %176 = sbr.rel (%p174) target = $region41
    $region40: #{tpu_custom_call.1} parent=1 // pred_region
      %v177 = vld [vmem:[#allocation2] sm:$0xff]
      %v178 = vld [vmem:[%s2] sm:$0x1]
      %v180 = vlaneseq
      %v181 = vshrl.u32 %v180, 7
      %v182 = vsub.s32 0, %v181
      %v183 = vrot.slane %v178, %v182
      %v185 = vadd.f32 %v177, %v183
      %v186 = vmax.f32 %v185, 0.0
      %v187 = vpack.c.bf16 %v186, %v186
      %v188 = vld [vmem:[#allocation8] sm:$0xf]
      %v189 = vld [vmem:[#allocation8 + $0x4] sm:$0xf]
      %v190 = vld [vmem:[#allocation8 + $0x8] sm:$0xf]
      %v191 = vld [vmem:[#allocation8 + $0xc] sm:$0xf]
      %v192 = vld [vmem:[#allocation8 + $0x10] sm:$0xf]
      %v193 = vld [vmem:[#allocation8 + $0x14] sm:$0xf]
      %v194 = vld [vmem:[#allocation8 + $0x18] sm:$0xf]
      %v195 = vld [vmem:[#allocation8 + $0x1c] sm:$0xf]
      %v196 = vld [vmem:[#allocation8 + $0x20] sm:$0xf]
      %v197 = vld [vmem:[#allocation8 + $0x24] sm:$0xf]
      %v198 = vld [vmem:[#allocation8 + $0x28] sm:$0xf]
      %v199 = vld [vmem:[#allocation8 + $0x2c] sm:$0xf]
      %v200 = vld [vmem:[#allocation8 + $0x30] sm:$0xf]
      %v201 = vld [vmem:[#allocation8 + $0x34] sm:$0xf]
      %v202 = vld [vmem:[#allocation8 + $0x38] sm:$0xf]
      %v203 = vld [vmem:[#allocation8 + $0x3c] sm:$0xf]
      %v204 = vld [vmem:[%s4] sm:$0x1]
      %v206 = vlaneseq
      %v207 = vshrl.u32 %v206, 7
      %v208 = vsub.s32 0, %v207
      %v209 = vrot.slane %v204, %v208
      %v227 = vunpack.c.l.b16 %v188
      %v228 = vunpack.c.l.b16 %v189
      %v229 = vunpack.c.l.b16 %v190
      %v230 = vunpack.c.l.b16 %v191
      %v231 = vunpack.c.l.b16 %v192
      %v232 = vunpack.c.l.b16 %v193
      %v233 = vunpack.c.l.b16 %v194
      %v234 = vunpack.c.l.b16 %v195
      %v235 = vunpack.c.l.b16 %v196
      %v236 = vunpack.c.l.b16 %v197
      %v237 = vunpack.c.l.b16 %v198
      %v238 = vunpack.c.l.b16 %v199
      %v239 = vunpack.c.l.b16 %v200
      %v240 = vunpack.c.l.b16 %v201
      %v241 = vunpack.c.l.b16 %v202
      %v242 = vunpack.c.l.b16 %v203
      %v243 = vpack.c.b16 %v228, %v227
      %v244 = vpack.c.b16 %v230, %v229
      %v245 = vpack.c.b16 %v232, %v231
      %v246 = vpack.c.b16 %v234, %v233
      %v247 = vpack.c.b16 %v236, %v235
      %v248 = vpack.c.b16 %v238, %v237
      %v249 = vpack.c.b16 %v240, %v239
      %v250 = vpack.c.b16 %v242, %v241
      %259 = vmatprep.subr.bf16.mxu0 0
      %260 = vmatpush1.bf16.msra.mxu0 %v243
      %261 = vmatprep.subr.bf16.mxu0 0
      %262 = vmatpush1.bf16.msra.mxu0 %v244
      %263 = vmatprep.subr.bf16.mxu0 0
      %264 = vmatpush1.bf16.msra.mxu0 %v245
      %265 = vmatprep.subr.bf16.mxu0 0
      %266 = vmatpush1.bf16.msra.mxu0 %v246
      %267 = vmatprep.subr.bf16.mxu0 0
      %268 = vmatpush1.bf16.msra.mxu0 %v247
      %269 = vmatprep.subr.bf16.mxu0 0
      %270 = vmatpush1.bf16.msra.mxu0 %v248
      %271 = vmatprep.subr.bf16.mxu0 0
      %272 = vmatpush1.bf16.msra.mxu0 %v249
      %273 = vmatprep.subr.bf16.mxu0 0
      %274 = vmatpush1.bf16.msra.mxu0 %v250
      %275 = vmatprep.subr.bf16.mxu0 0
      %276 = vmatpush1.bf16.msra.mxu0 0
      %277 = vmatprep.subr.bf16.mxu0 0
      %278 = vmatpush1.bf16.msra.mxu0 0
      %279 = vmatprep.subr.bf16.mxu0 0
      %280 = vmatpush1.bf16.msra.mxu0 0
      %281 = vmatprep.subr.bf16.mxu0 0
      %282 = vmatpush1.bf16.msra.mxu0 0
      %283 = vmatprep.subr.bf16.mxu0 0
      %284 = vmatpush1.bf16.msra.mxu0 0
      %285 = vmatprep.subr.bf16.mxu0 0
      %286 = vmatpush1.bf16.msra.mxu0 0
      %287 = vmatprep.subr.bf16.mxu0 0
      %288 = vmatpush1.bf16.msra.mxu0 0
      %289 = vmatprep.subr.bf16.mxu0 0
      %290 = vmatpush1.bf16.msra.mxu0 0
      %291 = vmatprep.mubr.bf16.mxu0 0
      %292 = vmatmul.mubr.bf16.gmra.mrb[0].mxu0 %v187
      %v293 = vpop.f32.mrb[0].mxu0
      %v294 = vadd.f32 %v209, %v293
      %v295 = vpop.f32.mrb[0].mxu0
      %v296 = vpop.f32.mrb[0].mxu0
      %v297 = vpop.f32.mrb[0].mxu0
      %298 = vdwg.mxu0
      %299 = vst [vmem:[#allocation9] sm:$0xff] %v294
    $region41: #{tpu_custom_call.1} parent=1 // pred_fallthru
      _
    // Predicated region
    $region42: #{tpu_custom_call.1} parent=1 // pred_check
      _
    $region43: #{tpu_custom_call.1} parent=1 // pred_check_branch
      %301 = sbr.rel (0) target = $region45
    $region44: #{tpu_custom_call.1} parent=1 // pred_region
      %s303 = ssub.s32 128, 128
      %304 = vsyncadd [#allocation5], %s303
      %s306 = sshll.u32 [#allocation9], 4
      %s307 = int_to_ptr.vmem [resolvable:$true] %s306
      %309 = dma.vmem_to_hbm [thread:$0]  %s307, 128, %s5, [#allocation5]
    $region45: #{tpu_custom_call.1} parent=1 // pred_fallthru
      _
    // Predicated region
    $region46: #{tpu_custom_call.1} parent=1 // pred_check
      _
    $region47: #{tpu_custom_call.1} parent=1 // pred_check_branch
      %311 = sbr.rel (0) target = $region49
    $region48: #{tpu_custom_call.1} parent=1 // pred_region
      %312 = dma.done [#allocation5], 128
    $region49: #{tpu_custom_call.1} parent=1 // pred_fallthru
      _
    %313 = vsyncpa [#allocation4], 1
    %314 = vsyncpa [#allocation7], 1
    %315 = vsyncpa [#allocation5], 1

// kernel: tpu_custom_call.1
$region0: #{tpu_custom_call.1}
  #allocation0 [shape = 'u32[]', space=smem, size = 0x4, offset = 0x4, fixed_abs, tag = 'smem constant byte address 0x4 - core index']
  #allocation1 [shape = 'u32[144,128]{1,0:T(1,128)}', space=vmem, size = 0x12000, scoped, tag = 'internal scratch']
  #allocation2 [shape = 'f32[8,128]{1,0:T(8,128)}', space=vmem, size = 0x1000, scoped, tag = 'scratch operand']
  %s0 = inlined_call_operand.hbm [shape: bf16[8,128], index: 0, kind: input, shape index: {}]
  %s1 = inlined_call_operand.hbm [shape: bf16[128,128], index: 1, kind: input, shape index: {}]
  %s2 = inlined_call_operand.vmem [shape: f32[1,128], index: 2, kind: input, shape index: {}]
  %s3 = inlined_call_operand.hbm [shape: bf16[128,128], index: 3, kind: input, shape index: {}]
  %s4 = inlined_call_operand.vmem [shape: f32[1,128], index: 4, kind: input, shape index: {}]
  %s5 = inlined_call_operand.hbm [shape: f32[8,128], index: 5, kind: output, shape index: {}]
  %s6 = sld [smem:[#allocation0]]
  $region50: #{tpu_custom_call.1} parent=0
    _
  %s8 = ssub.s32 1, %s6
  %s9 = scalar_select 0, %s8, %s6
  $region1: #{tpu_custom_call.1} parent=0
    #allocation3 [shape = 'u8[2048]{0}', space=vmem, size = 0x800, scoped, tag = 'input window, operand 0, single buffered']
    #allocation4 [shape = 's32[1]{0}', space=sflag, size = 0x4, scoped, tag = 'scoped memory for tpu_custom_call.1']
    #allocation5 [shape = 's32[1]{0}', space=sflag, size = 0x4, scoped, tag = 'scoped memory for tpu_custom_call.1']
    #allocation6 [shape = 'u8[32768]{0}', space=vmem, size = 0x8000, scoped, tag = 'input window, operand 1, single buffered']
    #allocation7 [shape = 's32[1]{0}', space=sflag, size = 0x4, scoped, tag = 'scoped memory for tpu_custom_call.1']
    #allocation8 [shape = 'u8[32768]{0}', space=vmem, size = 0x8000, scoped, tag = 'input window, operand 3, single buffered']
    #allocation9 [shape = 'u8[4096]{0}', space=vmem, size = 0x1000, scoped, tag = 'output window, operand 0, single buffered']
    %10 = vsyncpa [#allocation4], 0
    %11 = vsyncpa [#allocation7], 0
    %12 = vsyncpa [#allocation5], 0
    // Predicated region
    $region2: #{tpu_custom_call.1} parent=1 // pred_check
      _
    $region3: #{tpu_custom_call.1} parent=1 // pred_check_branch
      %14 = sbr.rel (0) target = $region5
    $region4: #{tpu_custom_call.1} parent=1 // pred_region
      %s16 = ssub.s32 64, 64
      %17 = vsyncadd [#allocation4], %s16
      %s19 = sshll.u32 [#allocation3], 4
      %s20 = int_to_ptr.vmem [resolvable:$true] %s19
      %22 = dma.hbm_to_vmem [thread:$0]  %s0, 64, %s20, [#allocation4]
    $region5: #{tpu_custom_call.1} parent=1 // pred_fallthru
      _
    // Predicated region
    $region6: #{tpu_custom_call.1} parent=1 // pred_check
      _
    $region7: #{tpu_custom_call.1} parent=1 // pred_check_branch
      %24 = sbr.rel (0) target = $region9
    $region8: #{tpu_custom_call.1} parent=1 // pred_region
      %s26 = ssub.s32 1024, 1024
      %27 = vsyncadd [#allocation7], %s26
      %s28 = sshll.u32 [#allocation6], 4
      %s29 = int_to_ptr.vmem [resolvable:$true] %s28
      %34 = dma.hbm_to_vmem [thread:$0]  %s1, 1024, %s29, [#allocation7], 64, 64, 4
    $region9: #{tpu_custom_call.1} parent=1 // pred_fallthru
      _
    // Predicated region
    $region10: #{tpu_custom_call.1} parent=1 // pred_check
      _
    $region11: #{tpu_custom_call.1} parent=1 // pred_check_branch
      %36 = sbr.rel (0) target = $region13
    $region12: #{tpu_custom_call.1} parent=1 // pred_region
      _
    $region13: #{tpu_custom_call.1} parent=1 // pred_fallthru
      _
    // Predicated region
    $region14: #{tpu_custom_call.1} parent=1 // pred_check
      _
    $region15: #{tpu_custom_call.1} parent=1 // pred_check_branch
      %38 = sbr.rel (0) target = $region17
    $region16: #{tpu_custom_call.1} parent=1 // pred_region
      %s40 = ssub.s32 1024, 1024
      %41 = vsyncadd [#allocation7], %s40
      %s42 = sshll.u32 [#allocation8], 4
      %s43 = int_to_ptr.vmem [resolvable:$true] %s42
      %48 = dma.hbm_to_vmem [thread:$0]  %s3, 1024, %s43, [#allocation7], 64, 64, 4
    $region17: #{tpu_custom_call.1} parent=1 // pred_fallthru
      _
    // Predicated region
    $region18: #{tpu_custom_call.1} parent=1 // pred_check
      _
    $region19: #{tpu_custom_call.1} parent=1 // pred_check_branch
      %50 = sbr.rel (0) target = $region21
    $region20: #{tpu_custom_call.1} parent=1 // pred_region
      _
    $region21: #{tpu_custom_call.1} parent=1 // pred_fallthru
      _
    // Predicated region
    $region22: #{tpu_custom_call.1} parent=1 // pred_check
      _
    $region23: #{tpu_custom_call.1} parent=1 // pred_check_branch
      %52 = sbr.rel (0) target = $region25
    $region24: #{tpu_custom_call.1} parent=1 // pred_region
      %53 = dma.done [#allocation4], 64
    $region25: #{tpu_custom_call.1} parent=1 // pred_fallthru
      _
    // Predicated region
    $region26: #{tpu_custom_call.1} parent=1 // pred_check
      _
    $region27: #{tpu_custom_call.1} parent=1 // pred_check_branch
      %55 = sbr.rel (0) target = $region29
    $region28: #{tpu_custom_call.1} parent=1 // pred_region
      %56 = dma.done [#allocation7], 1024
    $region29: #{tpu_custom_call.1} parent=1 // pred_fallthru
      _
    // Predicated region
    $region30: #{tpu_custom_call.1} parent=1 // pred_check
      _
    $region31: #{tpu_custom_call.1} parent=1 // pred_check_branch
      %58 = sbr.rel (0) target = $region33
    $region32: #{tpu_custom_call.1} parent=1 // pred_region
      %59 = dma.done [#allocation7], 1024
    $region33: #{tpu_custom_call.1} parent=1 // pred_fallthru
      _
    %p61 = scmp.eq.s32.totalorder 0, 0
    // Predicated region
    $region34: #{tpu_custom_call.1} parent=1 // pred_check
      %p62 = pneg %p61
    $region35: #{tpu_custom_call.1} parent=1 // pred_check_branch
      %64 = sbr.rel (%p62) target = $region37
    $region36: #{tpu_custom_call.1} parent=1 // pred_region
      %65 = vst [vmem:[#allocation2] sm:$0xff] 0.0
    $region37: #{tpu_custom_call.1} parent=1 // pred_fallthru
      _
    %v66 = vld [vmem:[#allocation2] sm:$0xff]
    %v67 = vld [vmem:[#allocation3] sm:$0xf]
    %v68 = vld [vmem:[#allocation6] sm:$0xf]
    %v69 = vld [vmem:[#allocation6 + $0x4] sm:$0xf]
    %v70 = vld [vmem:[#allocation6 + $0x8] sm:$0xf]
    %v71 = vld [vmem:[#allocation6 + $0xc] sm:$0xf]
    %v72 = vld [vmem:[#allocation6 + $0x10] sm:$0xf]
    %v73 = vld [vmem:[#allocation6 + $0x14] sm:$0xf]
    %v74 = vld [vmem:[#allocation6 + $0x18] sm:$0xf]
    %v75 = vld [vmem:[#allocation6 + $0x1c] sm:$0xf]
    %v76 = vld [vmem:[#allocation6 + $0x20] sm:$0xf]
    %v77 = vld [vmem:[#allocation6 + $0x24] sm:$0xf]
    %v78 = vld [vmem:[#allocation6 + $0x28] sm:$0xf]
    %v79 = vld [vmem:[#allocation6 + $0x2c] sm:$0xf]
    %v80 = vld [vmem:[#allocation6 + $0x30] sm:$0xf]
    %v81 = vld [vmem:[#allocation6 + $0x34] sm:$0xf]
    %v82 = vld [vmem:[#allocation6 + $0x38] sm:$0xf]
    %v83 = vld [vmem:[#allocation6 + $0x3c] sm:$0xf]
    %v100 = vunpack.c.l.b16 %v68
    %v101 = vunpack.c.l.b16 %v69
    %v102 = vunpack.c.l.b16 %v70
    %v103 = vunpack.c.l.b16 %v71
    %v104 = vunpack.c.l.b16 %v72
    %v105 = vunpack.c.l.b16 %v73
    %v106 = vunpack.c.l.b16 %v74
    %v107 = vunpack.c.l.b16 %v75
    %v108 = vunpack.c.l.b16 %v76
    %v109 = vunpack.c.l.b16 %v77
    %v110 = vunpack.c.l.b16 %v78
    %v111 = vunpack.c.l.b16 %v79
    %v112 = vunpack.c.l.b16 %v80
    %v113 = vunpack.c.l.b16 %v81
    %v114 = vunpack.c.l.b16 %v82
    %v115 = vunpack.c.l.b16 %v83
    %v116 = vpack.c.b16 %v101, %v100
    %v117 = vpack.c.b16 %v103, %v102
    %v118 = vpack.c.b16 %v105, %v104
    %v119 = vpack.c.b16 %v107, %v106
    %v120 = vpack.c.b16 %v109, %v108
    %v121 = vpack.c.b16 %v111, %v110
    %v122 = vpack.c.b16 %v113, %v112
    %v123 = vpack.c.b16 %v115, %v114
    %132 = vmatprep.subr.bf16.mxu0 0
    %133 = vmatpush1.bf16.msra.mxu0 %v116
    %134 = vmatprep.subr.bf16.mxu0 0
    %135 = vmatpush1.bf16.msra.mxu0 %v117
    %136 = vmatprep.subr.bf16.mxu0 0
    %137 = vmatpush1.bf16.msra.mxu0 %v118
    %138 = vmatprep.subr.bf16.mxu0 0
    %139 = vmatpush1.bf16.msra.mxu0 %v119
    %140 = vmatprep.subr.bf16.mxu0 0
    %141 = vmatpush1.bf16.msra.mxu0 %v120
    %142 = vmatprep.subr.bf16.mxu0 0
    %143 = vmatpush1.bf16.msra.mxu0 %v121
    %144 = vmatprep.subr.bf16.mxu0 0
    %145 = vmatpush1.bf16.msra.mxu0 %v122
    %146 = vmatprep.subr.bf16.mxu0 0
    %147 = vmatpush1.bf16.msra.mxu0 %v123
    %148 = vmatprep.subr.bf16.mxu0 0
    %149 = vmatpush1.bf16.msra.mxu0 0
    %150 = vmatprep.subr.bf16.mxu0 0
    %151 = vmatpush1.bf16.msra.mxu0 0
    %152 = vmatprep.subr.bf16.mxu0 0
    %153 = vmatpush1.bf16.msra.mxu0 0
    %154 = vmatprep.subr.bf16.mxu0 0
    %155 = vmatpush1.bf16.msra.mxu0 0
    %156 = vmatprep.subr.bf16.mxu0 0
    %157 = vmatpush1.bf16.msra.mxu0 0
    %158 = vmatprep.subr.bf16.mxu0 0
    %159 = vmatpush1.bf16.msra.mxu0 0
    %160 = vmatprep.subr.bf16.mxu0 0
    %161 = vmatpush1.bf16.msra.mxu0 0
    %162 = vmatprep.subr.bf16.mxu0 0
    %163 = vmatpush1.bf16.msra.mxu0 0
    %164 = vmatprep.mubr.bf16.mxu0 0
    %165 = vmatmul.mubr.bf16.gmra.mrb[0].mxu0 %v67
    %v166 = vpop.f32.mrb[0].mxu0
    %v167 = vadd.f32 0.0, %v166
    %v168 = vpop.f32.mrb[0].mxu0
    %v169 = vpop.f32.mrb[0].mxu0
    %v170 = vpop.f32.mrb[0].mxu0
    %171 = vdwg.mxu0
    %v172 = vadd.f32 %v66, %v167
    %173 = vst [vmem:[#allocation2] sm:$0xff] %v172
    // Predicated region
    $region38: #{tpu_custom_call.1} parent=1 // pred_check
      %p174 = pneg %p61
    $region39: #{tpu_custom_call.1} parent=1 // pred_check_branch
      %176 = sbr.rel (%p174) target = $region41
    $region40: #{tpu_custom_call.1} parent=1 // pred_region
      %v177 = vld [vmem:[#allocation2] sm:$0xff]
      %v178 = vld [vmem:[%s2] sm:$0x1]
      %v180 = vlaneseq
      %v181 = vshrl.u32 %v180, 7
      %v182 = vsub.s32 0, %v181
      %v183 = vrot.slane %v178, %v182
      %v185 = vadd.f32 %v177, %v183
      %v186 = vmax.f32 %v185, 0.0
      %v187 = vpack.c.bf16 %v186, %v186
      %v188 = vld [vmem:[#allocation8] sm:$0xf]
      %v189 = vld [vmem:[#allocation8 + $0x4] sm:$0xf]
      %v190 = vld [vmem:[#allocation8 + $0x8] sm:$0xf]
      %v191 = vld [vmem:[#allocation8 + $0xc] sm:$0xf]
      %v192 = vld [vmem:[#allocation8 + $0x10] sm:$0xf]
      %v193 = vld [vmem:[#allocation8 + $0x14] sm:$0xf]
      %v194 = vld [vmem:[#allocation8 + $0x18] sm:$0xf]
      %v195 = vld [vmem:[#allocation8 + $0x1c] sm:$0xf]
      %v196 = vld [vmem:[#allocation8 + $0x20] sm:$0xf]
      %v197 = vld [vmem:[#allocation8 + $0x24] sm:$0xf]
      %v198 = vld [vmem:[#allocation8 + $0x28] sm:$0xf]
      %v199 = vld [vmem:[#allocation8 + $0x2c] sm:$0xf]
      %v200 = vld [vmem:[#allocation8 + $0x30] sm:$0xf]
      %v201 = vld [vmem:[#allocation8 + $0x34] sm:$0xf]
      %v202 = vld [vmem:[#allocation8 + $0x38] sm:$0xf]
      %v203 = vld [vmem:[#allocation8 + $0x3c] sm:$0xf]
      %v204 = vld [vmem:[%s4] sm:$0x1]
      %v206 = vlaneseq
      %v207 = vshrl.u32 %v206, 7
      %v208 = vsub.s32 0, %v207
      %v209 = vrot.slane %v204, %v208
      %v227 = vunpack.c.l.b16 %v188
      %v228 = vunpack.c.l.b16 %v189
      %v229 = vunpack.c.l.b16 %v190
      %v230 = vunpack.c.l.b16 %v191
      %v231 = vunpack.c.l.b16 %v192
      %v232 = vunpack.c.l.b16 %v193
      %v233 = vunpack.c.l.b16 %v194
      %v234 = vunpack.c.l.b16 %v195
      %v235 = vunpack.c.l.b16 %v196
      %v236 = vunpack.c.l.b16 %v197
      %v237 = vunpack.c.l.b16 %v198
      %v238 = vunpack.c.l.b16 %v199
      %v239 = vunpack.c.l.b16 %v200
      %v240 = vunpack.c.l.b16 %v201
      %v241 = vunpack.c.l.b16 %v202
      %v242 = vunpack.c.l.b16 %v203
      %v243 = vpack.c.b16 %v228, %v227
      %v244 = vpack.c.b16 %v230, %v229
      %v245 = vpack.c.b16 %v232, %v231
      %v246 = vpack.c.b16 %v234, %v233
      %v247 = vpack.c.b16 %v236, %v235
      %v248 = vpack.c.b16 %v238, %v237
      %v249 = vpack.c.b16 %v240, %v239
      %v250 = vpack.c.b16 %v242, %v241
      %259 = vmatprep.subr.bf16.mxu0 0
      %260 = vmatpush1.bf16.msra.mxu0 %v243
      %261 = vmatprep.subr.bf16.mxu0 0
      %262 = vmatpush1.bf16.msra.mxu0 %v244
      %263 = vmatprep.subr.bf16.mxu0 0
      %264 = vmatpush1.bf16.msra.mxu0 %v245
      %265 = vmatprep.subr.bf16.mxu0 0
      %266 = vmatpush1.bf16.msra.mxu0 %v246
      %267 = vmatprep.subr.bf16.mxu0 0
      %268 = vmatpush1.bf16.msra.mxu0 %v247
      %269 = vmatprep.subr.bf16.mxu0 0
      %270 = vmatpush1.bf16.msra.mxu0 %v248
      %271 = vmatprep.subr.bf16.mxu0 0
      %272 = vmatpush1.bf16.msra.mxu0 %v249
      %273 = vmatprep.subr.bf16.mxu0 0
      %274 = vmatpush1.bf16.msra.mxu0 %v250
      %275 = vmatprep.subr.bf16.mxu0 0
      %276 = vmatpush1.bf16.msra.mxu0 0
      %277 = vmatprep.subr.bf16.mxu0 0
      %278 = vmatpush1.bf16.msra.mxu0 0
      %279 = vmatprep.subr.bf16.mxu0 0
      %280 = vmatpush1.bf16.msra.mxu0 0
      %281 = vmatprep.subr.bf16.mxu0 0
      %282 = vmatpush1.bf16.msra.mxu0 0
      %283 = vmatprep.subr.bf16.mxu0 0
      %284 = vmatpush1.bf16.msra.mxu0 0
      %285 = vmatprep.subr.bf16.mxu0 0
      %286 = vmatpush1.bf16.msra.mxu0 0
      %287 = vmatprep.subr.bf16.mxu0 0
      %288 = vmatpush1.bf16.msra.mxu0 0
      %289 = vmatprep.subr.bf16.mxu0 0
      %290 = vmatpush1.bf16.msra.mxu0 0
      %291 = vmatprep.mubr.bf16.mxu0 0
      %292 = vmatmul.mubr.bf16.gmra.mrb[0].mxu0 %v187
      %v293 = vpop.f32.mrb[0].mxu0
      %v294 = vadd.f32 %v209, %v293
      %v295 = vpop.f32.mrb[0].mxu0
      %v296 = vpop.f32.mrb[0].mxu0
      %v297 = vpop.f32.mrb[0].mxu0
      %298 = vdwg.mxu0
      %299 = vst [vmem:[#allocation9] sm:$0xff] %v294
    $region41: #{tpu_custom_call.1} parent=1 // pred_fallthru
      _
    // Predicated region
    $region42: #{tpu_custom_call.1} parent=1 // pred_check
      _
    $region43: #{tpu_custom_call.1} parent=1 // pred_check_branch
      %301 = sbr.rel (0) target = $region45
    $region44: #{tpu_custom_call.1} parent=1 // pred_region
      %s303 = ssub.s32 128, 128
      %304 = vsyncadd [#allocation5], %s303
      %s306 = sshll.u32 [#allocation9], 4
      %s307 = int_to_ptr.vmem [resolvable:$true] %s306
      %309 = dma.vmem_to_hbm [thread:$0]  %s307, 128, %s5, [#allocation5]
    $region45: #{tpu_custom_call.1} parent=1 // pred_fallthru
      _
    // Predicated region
    $region46: #{tpu_custom_call.1} parent=1 // pred_check
      _
    $region47: #{tpu_custom_call.1} parent=1 // pred_check_branch
      %311 = sbr.rel (0) target = $region49
    $region48: #{tpu_custom_call.1} parent=1 // pred_region
      %312 = dma.done [#allocation5], 128
    $region49: #{tpu_custom_call.1} parent=1 // pred_fallthru
      _
    %313 = vsyncpa [#allocation4], 1
    %314 = vsyncpa [#allocation7], 1
    %315 = vsyncpa [#allocation5], 1

</llo_original>
